<compile_context>
chip_gen: v7x
topology: tpu7x:2x2x1
jax: 0.10.0
libtpu: 0.0.40
codegen_flags: <defaults>
</compile_context>

<pallas_src>
import functools
from typing import NamedTuple

import jax
import jax.numpy as jnp
from jax.experimental import pallas as pl
from jax.experimental.pallas import tpu as pltpu

_EPS = 1e-12
_LANE = 128
_SUBLANE = 8
_TB_MAX = 256          # target batch tile (sublane-aligned)
_TC_MAX = 4096         # target class tile (lane-aligned), shrunk to fit VMEM


def _round_up(x, n):
    return ((x + n - 1) // n) * n


def _vmem_budget_bytes():
    """Generation-aware VMEM budget (leaves headroom for double-buffering)."""
    cap = 128 * 1024 * 1024
    try:
        cap = int(pltpu.get_tpu_info().vmem_capacity_bytes)
    except Exception:          # interpret mode / older runtimes: assume 128 MiB
        pass
    if cap <= 64 * 1024 * 1024:          # v7x-class: 64 MiB per TensorCore
        return 36 * 1024 * 1024
    return 96 * 1024 * 1024              # v5e / v6e: 128 MiB


def _estimate_vmem(tb, tc, Dp, in_item):
    """Double-buffered working set of one grid step (bytes)."""
    centers = 2 * Dp * tc * in_item          # (Dp, tc) centers tile, x2 bufs
    feat = 2 * tb * Dp * in_item             # (tb, Dp) feat tile
    label = 2 * tb * _LANE * 4               # (tb, 1) lane-padded
    outs = 2 * 2 * tb * tc * 4               # logits + margin f32 tiles
    scratch = _SUBLANE * tc * 4              # (1, tc) inv-norm row (sublane pad)
    return centers + feat + label + outs + scratch + (1 << 20)  # 1 MiB slack


def _plan(num_classes, feat_dim, block_c, in_dtype):
    """Choose the class tile / padded sizes (independent of batch size)."""
    Dp = _round_up(feat_dim, _LANE)
    Cp0 = _round_up(num_classes, _LANE)
    item = jnp.dtype(in_dtype).itemsize
    budget = _vmem_budget_bytes()

    tc = _round_up(min(block_c, Cp0), _LANE)
    while tc > _LANE and _estimate_vmem(_TB_MAX, tc, Dp, item) > budget:
        tc = _round_up(tc // 2, _LANE)
    # Megacore: ensure the "parallel" class axis has >= 2 tiles when it can
    # (v7x has 2 TensorCores per chip; cost on 1-TC parts is negligible).
    if Cp0 // tc < 2 and Cp0 >= 2 * _LANE:
        tc = _round_up((Cp0 + 1) // 2, _LANE)
    Cp = _round_up(Cp0, tc)
    return tc, Cp, Dp, budget


class PreparedCenters(NamedTuple):
    data: jax.Array      # (Dp, Cp), transposed + padded (+ optional bf16)
    num_classes: int
    feat_dim: int
    tc: int
    Cp: int
    Dp: int
    use_bf16: bool
    vmem_limit: int


def prepare_centers(centers, *, block_c=_TC_MAX, use_bf16=False):
    """One-time parameter prep: pad to (Dp, Cp) and transpose so the MXU sees a
    plain (K, N) operand. Cache the result across steps -- re-padding every
    call costs an extra full HBM pass over the centers matrix."""
    C, D = centers.shape
    dt = jnp.bfloat16 if use_bf16 else jnp.float32
    tc, Cp, Dp, vmem_limit = _plan(C, D, block_c, dt)
    cent_t = jnp.transpose(centers.astype(jnp.float32))          # (D, C)
    if (Dp, Cp) != (D, C):
        cent_t = jnp.zeros((Dp, Cp), jnp.float32).at[:D, :C].set(cent_t)
    return PreparedCenters(cent_t.astype(dt), C, D, tc, Cp, Dp, use_bf16,
                           vmem_limit)


def _lmcl_kernel(s, m, tc, feat_ref, cent_ref, label_ref,
                 logits_ref, margin_ref, invc_ref):
    """One (class tile, batch tile) grid step.

    feat_ref:   (tb, Dp)   pre-normalized features
    cent_ref:   (Dp, tc)   RAW (unnormalized) centers, pre-transposed
    label_ref:  (tb, 1)    int32 labels (-1 for padded rows)
    logits_ref / margin_ref: (tb, tc) f32 outputs
    invc_ref:   (1, tc)    VMEM scratch -- inverse L2 norms of this class tile,
                computed once per class tile (at batch tile 0) and reused.
    """
    ci = pl.program_id(0)   # class-tile index (outer, "parallel")
    bi = pl.program_id(1)   # batch-tile index (inner, "arbitrary")

    @pl.when(bi == 0)
    def _():
        cent = cent_ref[...].astype(jnp.float32)
        invc_ref[...] = jax.lax.rsqrt(
            jnp.sum(cent * cent, axis=0, keepdims=True) + _EPS)

    # Raw cosine numerators on the MXU: plain (M,K)x(K,N), no transpose/relayout.
    raw = jnp.dot(feat_ref[...], cent_ref[...],
                  preferred_element_type=jnp.float32)             # (tb, tc)
    logits = raw * invc_ref[...]                                  # /||c|| post-scale

    # margin = s * logits - (s*m) * one_hot(label)  -- folded, no y_onehot temp.
    label = label_ref[...]                                        # (tb, 1) i32
    cls_ids = ci * tc + jax.lax.broadcasted_iota(jnp.int32, logits.shape, 1)
    onehot = (cls_ids == label).astype(jnp.float32)

    logits_ref[...] = logits
    margin_ref[...] = jnp.float32(s) * logits - jnp.float32(s * m) * onehot
    # TODO(synk): for small feat_dim / v5e store-bound cases, fuse the
    # downstream softmax-CE here and emit per-row loss instead of the full
    # margin matrix (halves the two (B, C) output writes).


def lmcl_loss_forward(feat, label, prepared, s=7.0, m=0.2, block_b=_TB_MAX):
    """Pallas forward: returns (logits, margin_logits), both (B, C) float32."""
    B, D = feat.shape
    assert D == prepared.feat_dim, "feat_dim mismatch with prepared centers"
    C, tc, Cp, Dp = (prepared.num_classes, prepared.tc, prepared.Cp,
                     prepared.Dp)
    in_dt = jnp.bfloat16 if prepared.use_bf16 else jnp.float32

    # Normalize feat once in the wrapper (B*D is tiny); exact norm-then-divide
    # like the PyTorch module.
    nf = feat.astype(jnp.float32)
    nf = nf / jnp.sqrt(jnp.sum(nf * nf, axis=-1, keepdims=True))

    tb = max(_SUBLANE,
             _round_up(min(block_b, _round_up(B, _SUBLANE)), _SUBLANE))
    Bp = _round_up(B, tb)

    # Skip the padded-copy pass when shapes/dtypes are already kernel-ready.
    if (Bp, Dp) == (B, D) and jnp.dtype(in_dt) == nf.dtype:
        feat_p = nf
    else:
        feat_p = jnp.zeros((Bp, Dp), in_dt).at[:B, :D].set(nf.astype(in_dt))
    if Bp == B:
        label_p = label.astype(jnp.int32).reshape(B, 1)
    else:
        # Padded batch rows get label -1 so they never match a real class id.
        label_p = jnp.full((Bp, 1), -1, jnp.int32).at[:B, 0].set(
            label.astype(jnp.int32))

    grid = (Cp // tc, Bp // tb)
    kernel = functools.partial(_lmcl_kernel, float(s), float(m), tc)

    logits_p, margin_p = pl.pallas_call(
        kernel,
        out_shape=(
            jax.ShapeDtypeStruct((Bp, Cp), jnp.float32),
            jax.ShapeDtypeStruct((Bp, Cp), jnp.float32),
        ),
        grid_spec=pltpu.PrefetchScalarGridSpec(
            num_scalar_prefetch=0,
            grid=grid,
            in_specs=[
                pl.BlockSpec((tb, Dp), lambda ci, bi: (bi, 0)),   # feat
                pl.BlockSpec((Dp, tc), lambda ci, bi: (0, ci)),   # centers^T
                pl.BlockSpec((tb, 1), lambda ci, bi: (bi, 0)),    # label
            ],
            out_specs=(
                pl.BlockSpec((tb, tc), lambda ci, bi: (bi, ci)),  # logits
                pl.BlockSpec((tb, tc), lambda ci, bi: (bi, ci)),  # margin
            ),
            scratch_shapes=[pltpu.VMEM((1, tc), jnp.float32)],    # 1/||c|| row
        ),
        compiler_params=pltpu.CompilerParams(
            dimension_semantics=("parallel", "arbitrary"),
            vmem_limit_bytes=int(prepared.vmem_limit),
        ),
    )(feat_p, prepared.data, label_p)

    return logits_p[:B, :C], margin_p[:B, :C]


def lmcl_loss(feat, centers, label, s=7.0, m=0.2, use_bf16=False):
    """Convenience wrapper matching LMCL_loss.forward(feat, label)."""
    return lmcl_loss_forward(feat, label,
                             prepare_centers(centers, use_bf16=use_bf16),
                             s=s, m=m)


if __name__ == "__main__":
    # Small shapes consistent with the module: batch=8, feat_dim=32, classes=16.
    B, D, C = 8, 32, 16
    s_scale, m_margin = 7.0, 0.2

    key = jax.random.PRNGKey(0)
    k_feat, k_cent, k_lab = jax.random.split(key, 3)
    feat = jax.random.normal(k_feat, (B, D), dtype=jnp.float32)
    centers = jax.random.normal(k_cent, (C, D), dtype=jnp.float32)
    label = jax.random.randint(k_lab, (B,), 0, C, dtype=jnp.int32)

    # Pure-JAX reference.
    nfeat = feat / jnp.linalg.norm(feat, axis=-1, keepdims=True)
    ncent = centers / jnp.linalg.norm(centers, axis=-1, keepdims=True)
    ref_logits = nfeat @ ncent.T
    ref_margin = s_scale * (ref_logits - m_margin * jax.nn.one_hot(label, C))

    # f32 path (exact-math validation). Centers prepared once and reused.
    prep = prepare_centers(centers)
    logits, margin_logits = lmcl_loss_forward(feat, label, prep,
                                              s=s_scale, m=m_margin)
    jax.block_until_ready((logits, margin_logits))
    assert logits.shape == (B, C) and margin_logits.shape == (B, C)
    assert jnp.allclose(logits, ref_logits, atol=1e-5, rtol=1e-5)
    assert jnp.allclose(margin_logits, ref_margin, atol=1e-5, rtol=1e-5)

    # bf16 MXU path (2x MXU rate, half the centers DMA) -- looser tolerance.
    logits_bf, margin_bf = lmcl_loss(feat, centers, label,
                                     s=s_scale, m=m_margin, use_bf16=True)
    jax.block_until_ready((logits_bf, margin_bf))
    assert jnp.allclose(logits_bf, ref_logits, atol=3e-2, rtol=3e-2)
    assert jnp.allclose(margin_bf, ref_margin, atol=2.5e-1, rtol=3e-2)

    print("KERNEL_OK")
</pallas_src>

<mosaic_0001>
module attributes {stable_mosaic.version = 11 : i64} {
  func.func @_lmcl_kernel(%arg0: i32, %arg1: i32, %arg2: memref<8x128xf32, #tpu.memory_space<vmem>>, %arg3: memref<128x128xf32, #tpu.memory_space<vmem>>, %arg4: memref<8x1xi32, #tpu.memory_space<vmem>>, %arg5: memref<8x128xf32, #tpu.memory_space<vmem>>, %arg6: memref<8x128xf32, #tpu.memory_space<vmem>>, %arg7: memref<1x128xf32, #tpu.memory_space<vmem>>) attributes {dimension_semantics = [#tpu.dimension_semantics<parallel>, #tpu.dimension_semantics<arbitrary>], iteration_bounds = array<i64: 1, 1>, scalar_prefetch = 0 : i64, scratch_operands = 1 : i64, tpu.core_type = #tpu.core_type<tc>, window_params = [{transform_indices = @transform_0, window_bounds = array<i64: 8, 128>}, {transform_indices = @transform_1, window_bounds = array<i64: 128, 128>}, {transform_indices = @transform_2, window_bounds = array<i64: 8, 1>}, {transform_indices = @transform_3, window_bounds = array<i64: 8, 128>}, {transform_indices = @transform_4, window_bounds = array<i64: 8, 128>}]} {
    %c0_i32 = arith.constant 0 : i32
    %0 = arith.cmpi eq, %arg1, %c0_i32 : i32
    %1 = arith.extui %0 : i1 to i32
    %c0_i32_0 = arith.constant 0 : i32
    %2 = arith.cmpi ne, %1, %c0_i32_0 : i32
    scf.if %2 {
      %c0_14 = arith.constant 0 : index
      %c0_15 = arith.constant 0 : index
      %25 = vector.load %arg3[%c0_14, %c0_15] : memref<128x128xf32, #tpu.memory_space<vmem>>, vector<128x128xf32>
      %26 = arith.mulf %25, %25 : vector<128x128xf32>
      %cst_16 = arith.constant dense<0.000000e+00> : vector<128xf32>
      %27 = vector.multi_reduction <add>, %26, %cst_16 [0] : vector<128x128xf32> to vector<128xf32>
      %28 = vector.shape_cast %27 : vector<128xf32> to vector<1x128xf32>
      %cst_17 = arith.constant 9.99999996E-13 : f32
      %29 = vector.broadcast %cst_17 : f32 to vector<1x128xf32>
      %30 = arith.addf %28, %29 : vector<1x128xf32>
      %31 = math.rsqrt %30 : vector<1x128xf32>
      %c0_18 = arith.constant 0 : index
      %c0_19 = arith.constant 0 : index
      %32 = vector.load %arg7[%c0_18, %c0_19] : memref<1x128xf32, #tpu.memory_space<vmem>>, vector<1x128xf32>
      tpu.vector_store %arg7[%c0_18, %c0_19], %31 {strides = array<i32>} : memref<1x128xf32, #tpu.memory_space<vmem>>, vector<1x128xf32>,
    } else {
    }
    %c0 = arith.constant 0 : index
    %c0_1 = arith.constant 0 : index
    %3 = vector.load %arg2[%c0, %c0_1] : memref<8x128xf32, #tpu.memory_space<vmem>>, vector<8x128xf32>
    %c0_2 = arith.constant 0 : index
    %c0_3 = arith.constant 0 : index
    %4 = vector.load %arg3[%c0_2, %c0_3] : memref<128x128xf32, #tpu.memory_space<vmem>>, vector<128x128xf32>
    %cst = arith.constant dense<0.000000e+00> : vector<8x128xf32>
    %5 = tpu.matmul %3, %4, %cst {dimension_numbers = #tpu.dot_dimension_numbers<[1], [0], [0], [1], [0, 0, 1, 1], [], []>} : vector<8x128xf32>, vector<128x128xf32>, vector<8x128xf32> -> vector<8x128xf32>
    %c0_4 = arith.constant 0 : index
    %c0_5 = arith.constant 0 : index
    %6 = vector.load %arg7[%c0_4, %c0_5] : memref<1x128xf32, #tpu.memory_space<vmem>>, vector<1x128xf32>
    %7 = vector.broadcast %6 : vector<1x128xf32> to vector<8x128xf32>
    %8 = arith.mulf %5, %7 : vector<8x128xf32>
    %c0_6 = arith.constant 0 : index
    %c0_7 = arith.constant 0 : index
    %9 = vector.load %arg4[%c0_6, %c0_7] : memref<8x1xi32, #tpu.memory_space<vmem>>, vector<8x1xi32>
    %c128_i32 = arith.constant 128 : i32
    %10 = arith.muli %arg0, %c128_i32 : i32
    %11 = tpu.iota {dimensions = array<i32: 1>} : vector<8x128xi32>
    %12 = vector.broadcast %10 : i32 to vector<8x128xi32>
    %13 = arith.addi %12, %11 : vector<8x128xi32>
    %14 = vector.broadcast %9 : vector<8x1xi32> to vector<8x128xi32>
    %15 = arith.cmpi eq, %13, %14 : vector<8x128xi32>
    %16 = arith.extui %15 : vector<8x128xi1> to vector<8x128xi32>
    %17 = arith.sitofp %16 : vector<8x128xi32> to vector<8x128xf32>
    %c0_8 = arith.constant 0 : index
    %c0_9 = arith.constant 0 : index
    %18 = vector.load %arg5[%c0_8, %c0_9] : memref<8x128xf32, #tpu.memory_space<vmem>>, vector<8x128xf32>
    tpu.vector_store %arg5[%c0_8, %c0_9], %8 {strides = array<i32>} : memref<8x128xf32, #tpu.memory_space<vmem>>, vector<8x128xf32>,
    %cst_10 = arith.constant 7.000000e+00 : f32
    %19 = vector.broadcast %cst_10 : f32 to vector<8x128xf32>
    %20 = arith.mulf %19, %8 : vector<8x128xf32>
    %cst_11 = arith.constant 1.400000e+00 : f32
    %21 = vector.broadcast %cst_11 : f32 to vector<8x128xf32>
    %22 = arith.mulf %21, %17 : vector<8x128xf32>
    %23 = arith.subf %20, %22 : vector<8x128xf32>
    %c0_12 = arith.constant 0 : index
    %c0_13 = arith.constant 0 : index
    %24 = vector.load %arg6[%c0_12, %c0_13] : memref<8x128xf32, #tpu.memory_space<vmem>>, vector<8x128xf32>
    tpu.vector_store %arg6[%c0_12, %c0_13], %23 {strides = array<i32>} : memref<8x128xf32, #tpu.memory_space<vmem>>, vector<8x128xf32>,
    return
  }
  func.func @transform_0(%arg0: i32, %arg1: i32) -> (i32, i32) {
    %c0_i32 = arith.constant 0 : i32
    %c0_i32_0 = arith.constant 0 : i32
    return %arg1, %c0_i32 : i32, i32
  }
  func.func @transform_1(%arg0: i32, %arg1: i32) -> (i32, i32) {
    %c0_i32 = arith.constant 0 : i32
    %c0_i32_0 = arith.constant 0 : i32
    return %c0_i32, %arg0 : i32, i32
  }
  func.func @transform_2(%arg0: i32, %arg1: i32) -> (i32, i32) {
    %c0_i32 = arith.constant 0 : i32
    %c0_i32_0 = arith.constant 0 : i32
    return %arg1, %c0_i32 : i32, i32
  }
  func.func @transform_3(%arg0: i32, %arg1: i32) -> (i32, i32) {
    %c0_i32 = arith.constant 0 : i32
    return %arg1, %arg0 : i32, i32
  }
  func.func @transform_4(%arg0: i32, %arg1: i32) -> (i32, i32) {
    %c0_i32 = arith.constant 0 : i32
    return %arg1, %arg0 : i32, i32
  }
}

</mosaic_0001>

<llo_original>
// kernel: tpu_custom_call.1
$region0: #{tpu_custom_call.1}
  #allocation0 [shape = 'u32[]', space=smem, size = 0x4, offset = 0x4, fixed_abs, tag = 'smem constant byte address 0x4 - core index']
  #allocation1 [shape = 'u32[144,128]{1,0:T(1,128)}', space=vmem, size = 0x12000, scoped, tag = 'internal scratch']
  #allocation2 [shape = 'f32[1,128]{1,0:T(1,128)}', space=vmem, size = 0x200, scoped, tag = 'scratch operand']
  %s0 = inlined_call_operand.hbm [shape: f32[8,128], index: 0, kind: input, shape index: {}]
  %s1 = inlined_call_operand.hbm [shape: f32[128,128], index: 1, kind: input, shape index: {}]
  %s2 = inlined_call_operand.hbm [shape: s32[8,1], index: 2, kind: input, shape index: {}]
  %s3 = inlined_call_operand.hbm [shape: f32[8,128], index: 3, kind: output, shape index: {0}]
  %s4 = inlined_call_operand.hbm [shape: f32[8,128], index: 4, kind: output, shape index: {1}]
  %5 = xla_tuple %s3, %s4
  %s6 = sld [smem:[#allocation0]]
  $region46: #{tpu_custom_call.1} parent=0
    _
  %s8 = ssub.s32 1, %s6
  %s9 = scalar_select 0, %s8, %s6
  $region1: #{tpu_custom_call.1} parent=0
    #allocation3 [shape = 'u8[4096]{0}', space=vmem, size = 0x1000, scoped, tag = 'input window, operand 0, single buffered']
    #allocation4 [shape = 's32[1]{0}', space=sflag, size = 0x4, scoped, tag = 'scoped memory for tpu_custom_call.1']
    #allocation5 [shape = 's32[1]{0}', space=sflag, size = 0x4, scoped, tag = 'scoped memory for tpu_custom_call.1']
    #allocation6 [shape = 'u8[65536]{0}', space=vmem, size = 0x10000, scoped, tag = 'input window, operand 1, single buffered']
    #allocation7 [shape = 's32[1]{0}', space=sflag, size = 0x4, scoped, tag = 'scoped memory for tpu_custom_call.1']
    #allocation8 [shape = 'u8[4096]{0}', space=vmem, size = 0x1000, scoped, tag = 'input window, operand 2, single buffered']
    #allocation9 [shape = 'u8[4096]{0}', space=vmem, size = 0x1000, scoped, tag = 'output window, operand 0, single buffered']
    #allocation10 [shape = 'u8[4096]{0}', space=vmem, size = 0x1000, scoped, tag = 'output window, operand 1, single buffered']
    #allocation11 [shape = 's32[1]{0}', space=sflag, size = 0x4, scoped, tag = 'scoped memory for tpu_custom_call.1']
    %10 = vsyncpa [#allocation4], 0
    %11 = vsyncpa [#allocation7], 0
    %12 = vsyncpa [#allocation5], 0
    %13 = vsyncpa [#allocation11], 0
    // Predicated region
    $region2: #{tpu_custom_call.1} parent=1 // pred_check
      _
    $region3: #{tpu_custom_call.1} parent=1 // pred_check_branch
      %15 = sbr.rel (0) target = $region5
    $region4: #{tpu_custom_call.1} parent=1 // pred_region
      %s17 = ssub.s32 128, 128
      %18 = vsyncadd [#allocation4], %s17
      %s20 = sshll.u32 [#allocation3], 4
      %s21 = int_to_ptr.vmem [resolvable:$true] %s20
      %23 = dma.hbm_to_vmem [thread:$0]  %s0, 128, %s21, [#allocation4]
    $region5: #{tpu_custom_call.1} parent=1 // pred_fallthru
      _
    // Predicated region
    $region6: #{tpu_custom_call.1} parent=1 // pred_check
      _
    $region7: #{tpu_custom_call.1} parent=1 // pred_check_branch
      %25 = sbr.rel (0) target = $region9
    $region8: #{tpu_custom_call.1} parent=1 // pred_region
      %s27 = ssub.s32 2048, 2048
      %28 = vsyncadd [#allocation7], %s27
      %s29 = sshll.u32 [#allocation6], 4
      %s30 = int_to_ptr.vmem [resolvable:$true] %s29
      %35 = dma.hbm_to_vmem [thread:$0]  %s1, 2048, %s30, [#allocation7], 128, 128, 8
    $region9: #{tpu_custom_call.1} parent=1 // pred_fallthru
      _
    // Predicated region
    $region10: #{tpu_custom_call.1} parent=1 // pred_check
      _
    $region11: #{tpu_custom_call.1} parent=1 // pred_check_branch
      %37 = sbr.rel (0) target = $region13
    $region12: #{tpu_custom_call.1} parent=1 // pred_region
      %s39 = ssub.s32 128, 128
      %40 = vsyncadd [#allocation7], %s39
      %s42 = sshll.u32 [#allocation8], 4
      %s43 = int_to_ptr.vmem [resolvable:$true] %s42
      %45 = dma.hbm_to_vmem [thread:$0]  %s2, 128, %s43, [#allocation7]
    $region13: #{tpu_custom_call.1} parent=1 // pred_fallthru
      _
    // Predicated region
    $region14: #{tpu_custom_call.1} parent=1 // pred_check
      _
    $region15: #{tpu_custom_call.1} parent=1 // pred_check_branch
      %47 = sbr.rel (0) target = $region17
    $region16: #{tpu_custom_call.1} parent=1 // pred_region
      %48 = dma.done [#allocation4], 128
    $region17: #{tpu_custom_call.1} parent=1 // pred_fallthru
      _
    // Predicated region
    $region18: #{tpu_custom_call.1} parent=1 // pred_check
      _
    $region19: #{tpu_custom_call.1} parent=1 // pred_check_branch
      %50 = sbr.rel (0) target = $region21
    $region20: #{tpu_custom_call.1} parent=1 // pred_region
      %51 = dma.done [#allocation7], 2048
    $region21: #{tpu_custom_call.1} parent=1 // pred_fallthru
      _
    // Predicated region
    $region22: #{tpu_custom_call.1} parent=1 // pred_check
      _
    $region23: #{tpu_custom_call.1} parent=1 // pred_check_branch
      %53 = sbr.rel (0) target = $region25
    $region24: #{tpu_custom_call.1} parent=1 // pred_region
      %54 = dma.done [#allocation7], 128
    $region25: #{tpu_custom_call.1} parent=1 // pred_fallthru
      _
    %p55 = scmp.eq.s32.totalorder 0, 0
    // Predicated region
    $region26: #{tpu_custom_call.1} parent=1 // pred_check
      %p56 = pneg %p55
    $region27: #{tpu_custom_call.1} parent=1 // pred_check_branch
      %58 = sbr.rel (%p56) target = $region29
    $region28: #{tpu_custom_call.1} parent=1 // pred_region
      %v59 = vld [vmem:[#allocation6] sm:$0xff]
      %v60 = vld [vmem:[#allocation6 + $0x8] sm:$0xff]
      %v61 = vld [vmem:[#allocation6 + $0x10] sm:$0xff]
      %v62 = vld [vmem:[#allocation6 + $0x18] sm:$0xff]
      %v63 = vld [vmem:[#allocation6 + $0x20] sm:$0xff]
      %v64 = vld [vmem:[#allocation6 + $0x28] sm:$0xff]
      %v65 = vld [vmem:[#allocation6 + $0x30] sm:$0xff]
      %v66 = vld [vmem:[#allocation6 + $0x38] sm:$0xff]
      %v67 = vld [vmem:[#allocation6 + $0x40] sm:$0xff]
      %v68 = vld [vmem:[#allocation6 + $0x48] sm:$0xff]
      %v69 = vld [vmem:[#allocation6 + $0x50] sm:$0xff]
      %v70 = vld [vmem:[#allocation6 + $0x58] sm:$0xff]
      %v71 = vld [vmem:[#allocation6 + $0x60] sm:$0xff]
      %v72 = vld [vmem:[#allocation6 + $0x68] sm:$0xff]
      %v73 = vld [vmem:[#allocation6 + $0x70] sm:$0xff]
      %v74 = vld [vmem:[#allocation6 + $0x78] sm:$0xff]
      %v75 = vmul.f32 %v59, %v59
      %v76 = vmul.f32 %v60, %v60
      %v77 = vmul.f32 %v61, %v61
      %v78 = vmul.f32 %v62, %v62
      %v79 = vmul.f32 %v63, %v63
      %v80 = vmul.f32 %v64, %v64
      %v81 = vmul.f32 %v65, %v65
      %v82 = vmul.f32 %v66, %v66
      %v83 = vmul.f32 %v67, %v67
      %v84 = vmul.f32 %v68, %v68
      %v85 = vmul.f32 %v69, %v69
      %v86 = vmul.f32 %v70, %v70
      %v87 = vmul.f32 %v71, %v71
      %v88 = vmul.f32 %v72, %v72
      %v89 = vmul.f32 %v73, %v73
      %v90 = vmul.f32 %v74, %v74
      %v91 = vadd.f32 %v75, %v76
      %v92 = vadd.f32 %v91, %v77
      %v93 = vadd.f32 %v92, %v78
      %v94 = vadd.f32 %v93, %v79
      %v95 = vadd.f32 %v94, %v80
      %v96 = vadd.f32 %v95, %v81
      %v97 = vadd.f32 %v96, %v82
      %v98 = vadd.f32 %v97, %v83
      %v99 = vadd.f32 %v98, %v84
      %v100 = vadd.f32 %v99, %v85
      %v101 = vadd.f32 %v100, %v86
      %v102 = vadd.f32 %v101, %v87
      %v103 = vadd.f32 %v102, %v88
      %v104 = vadd.f32 %v103, %v89
      %v105 = vadd.f32 %v104, %v90
      %v106 = vrot.slane %v105, 4
      %v107 = vadd.f32 %v105, %v106
      %v108 = vrot.slane %v107, 2
      %v109 = vadd.f32 %v107, %v108
      %v110 = vrot.slane %v109, 1
      %v111 = vadd.f32 %v109, %v110
      %v112 = vadd.f32 %v111, 1e-12
      %v113 = vrsqrt.pop %v112
      %114 = vst [vmem:[#allocation2] sm:$0x1] %v113
    $region29: #{tpu_custom_call.1} parent=1 // pred_fallthru
      _
    %v115 = vld [vmem:[#allocation3] sm:$0xff]
    %v116 = vld [vmem:[#allocation6] sm:$0xff]
    %v117 = vld [vmem:[#allocation6 + $0x8] sm:$0xff]
    %v118 = vld [vmem:[#allocation6 + $0x10] sm:$0xff]
    %v119 = vld [vmem:[#allocation6 + $0x18] sm:$0xff]
    %v120 = vld [vmem:[#allocation6 + $0x20] sm:$0xff]
    %v121 = vld [vmem:[#allocation6 + $0x28] sm:$0xff]
    %v122 = vld [vmem:[#allocation6 + $0x30] sm:$0xff]
    %v123 = vld [vmem:[#allocation6 + $0x38] sm:$0xff]
    %v124 = vld [vmem:[#allocation6 + $0x40] sm:$0xff]
    %v125 = vld [vmem:[#allocation6 + $0x48] sm:$0xff]
    %v126 = vld [vmem:[#allocation6 + $0x50] sm:$0xff]
    %v127 = vld [vmem:[#allocation6 + $0x58] sm:$0xff]
    %v128 = vld [vmem:[#allocation6 + $0x60] sm:$0xff]
    %v129 = vld [vmem:[#allocation6 + $0x68] sm:$0xff]
    %v130 = vld [vmem:[#allocation6 + $0x70] sm:$0xff]
    %v131 = vld [vmem:[#allocation6 + $0x78] sm:$0xff]
    %132 = vmatprep.subr.mxu0 0.0
    %133 = vmatpush1.msra.mxu0 %v116
    %134 = vmatprep.subr.mxu0 0.0
    %135 = vmatpush1.msra.mxu0 %v117
    %136 = vmatprep.subr.mxu0 0.0
    %137 = vmatpush1.msra.mxu0 %v118
    %138 = vmatprep.subr.mxu0 0.0
    %139 = vmatpush1.msra.mxu0 %v119
    %140 = vmatprep.subr.mxu0 0.0
    %141 = vmatpush1.msra.mxu0 %v120
    %142 = vmatprep.subr.mxu0 0.0
    %143 = vmatpush1.msra.mxu0 %v121
    %144 = vmatprep.subr.mxu0 0.0
    %145 = vmatpush1.msra.mxu0 %v122
    %146 = vmatprep.subr.mxu0 0.0
    %147 = vmatpush1.msra.mxu0 %v123
    %148 = vmatprep.subr.mxu0 0.0
    %149 = vmatpush1.msra.mxu0 %v124
    %150 = vmatprep.subr.mxu0 0.0
    %151 = vmatpush1.msra.mxu0 %v125
    %152 = vmatprep.subr.mxu0 0.0
    %153 = vmatpush1.msra.mxu0 %v126
    %154 = vmatprep.subr.mxu0 0.0
    %155 = vmatpush1.msra.mxu0 %v127
    %156 = vmatprep.subr.mxu0 0.0
    %157 = vmatpush1.msra.mxu0 %v128
    %158 = vmatprep.subr.mxu0 0.0
    %159 = vmatpush1.msra.mxu0 %v129
    %160 = vmatprep.subr.mxu0 0.0
    %161 = vmatpush1.msra.mxu0 %v130
    %162 = vmatprep.subr.mxu0 0.0
    %163 = vmatpush1.msra.mxu0 %v131
    %164 = vmatprep.subr.mxu0 0.0
    %165 = vmatpush1.msra.mxu0 0.0
    %166 = vmatprep.subr.mxu0 0.0
    %167 = vmatpush1.msra.mxu0 0.0
    %168 = vmatprep.subr.mxu0 0.0
    %169 = vmatpush1.msra.mxu0 0.0
    %170 = vmatprep.subr.mxu0 0.0
    %171 = vmatpush1.msra.mxu0 0.0
    %172 = vmatprep.subr.mxu0 0.0
    %173 = vmatpush1.msra.mxu0 0.0
    %174 = vmatprep.subr.mxu0 0.0
    %175 = vmatpush1.msra.mxu0 0.0
    %176 = vmatprep.subr.mxu0 0.0
    %177 = vmatpush1.msra.mxu0 0.0
    %178 = vmatprep.subr.mxu0 0.0
    %179 = vmatpush1.msra.mxu0 0.0
    %180 = vmatprep.subr.mxu0 0.0
    %181 = vmatpush1.msra.mxu0 0.0
    %182 = vmatprep.subr.mxu0 0.0
    %183 = vmatpush1.msra.mxu0 0.0
    %184 = vmatprep.subr.mxu0 0.0
    %185 = vmatpush1.msra.mxu0 0.0
    %186 = vmatprep.subr.mxu0 0.0
    %187 = vmatpush1.msra.mxu0 0.0
    %188 = vmatprep.subr.mxu0 0.0
    %189 = vmatpush1.msra.mxu0 0.0
    %190 = vmatprep.subr.mxu0 0.0
    %191 = vmatpush1.msra.mxu0 0.0
    %192 = vmatprep.subr.mxu0 0.0
    %193 = vmatpush1.msra.mxu0 0.0
    %194 = vmatprep.subr.mxu0 0.0
    %195 = vmatpush1.msra.mxu0 0.0
    %196 = vmatprep.mubr.f32.mxu0 0.0
    %197 = vmatmul.mubr.f32.gmra.mrb[0].mxu0 %v115
    %v198 = vpop.f32.mrb[0].mxu0
    %v199 = vadd.f32 0.0, %v198
    %v200 = vpop.f32.mrb[0].mxu0
    %201 = vdwg.mxu0
    %v202 = vld [vmem:[#allocation2] sm:$0x1]
    %v204 = vlaneseq
    %v205 = vshrl.u32 %v204, 7
    %v206 = vsub.s32 0, %v205
    %v207 = vrot.slane %v202, %v206
    %v209 = vmul.f32 %v199, %v207
    %v210 = vld [vmem:[#allocation8] sm:$0xff]
    %s211 = smul.u32 0, 128
    %v212 = vlaneseq
    %v213 = vand.u32 %v212, 127
    %v214 = vstv %s211
    %v215 = vadd.s32 %v214, %v213
    %216 = vset.pattern.permute.xlu0 0
    %217 = vperm.xlu0 %216, %v210
    %v218 = vpop.permute.xlu0 %217
    %vm219 = vcmp.eq.s32.totalorder %v215, %v218
    %v220 = vsel %vm219, 1, 0
    %v221 = vcvt.s32.f32 %v220
    %222 = vst [vmem:[#allocation9] sm:$0xff] %v209
    %v223 = vmul.f32 %v209, 7.0
    %v224 = vmul.f32 %v221, 1.4
    %v225 = vsub.f32 %v223, %v224
    %226 = vst [vmem:[#allocation10] sm:$0xff] %v225
    // Predicated region
    $region30: #{tpu_custom_call.1} parent=1 // pred_check
      _
    $region31: #{tpu_custom_call.1} parent=1 // pred_check_branch
      %228 = sbr.rel (0) target = $region33
    $region32: #{tpu_custom_call.1} parent=1 // pred_region
      %s230 = ssub.s32 128, 128
      %231 = vsyncadd [#allocation5], %s230
      %s233 = sshll.u32 [#allocation9], 4
      %s234 = int_to_ptr.vmem [resolvable:$true] %s233
      %236 = dma.vmem_to_hbm [thread:$0]  %s234, 128, %s3, [#allocation5]
    $region33: #{tpu_custom_call.1} parent=1 // pred_fallthru
      _
    // Predicated region
    $region34: #{tpu_custom_call.1} parent=1 // pred_check
      _
    $region35: #{tpu_custom_call.1} parent=1 // pred_check_branch
      %238 = sbr.rel (0) target = $region37
    $region36: #{tpu_custom_call.1} parent=1 // pred_region
      %s240 = ssub.s32 128, 128
      %241 = vsyncadd [#allocation11], %s240
      %s243 = sshll.u32 [#allocation10], 4
      %s244 = int_to_ptr.vmem [resolvable:$true] %s243
      %246 = dma.vmem_to_hbm [thread:$0]  %s244, 128, %s4, [#allocation11]
    $region37: #{tpu_custom_call.1} parent=1 // pred_fallthru
      _
    // Predicated region
    $region38: #{tpu_custom_call.1} parent=1 // pred_check
      _
    $region39: #{tpu_custom_call.1} parent=1 // pred_check_branch
      %248 = sbr.rel (0) target = $region41
    $region40: #{tpu_custom_call.1} parent=1 // pred_region
      %249 = dma.done [#allocation5], 128
    $region41: #{tpu_custom_call.1} parent=1 // pred_fallthru
      _
    // Predicated region
    $region42: #{tpu_custom_call.1} parent=1 // pred_check
      _
    $region43: #{tpu_custom_call.1} parent=1 // pred_check_branch
      %251 = sbr.rel (0) target = $region45
    $region44: #{tpu_custom_call.1} parent=1 // pred_region
      %252 = dma.done [#allocation11], 128
    $region45: #{tpu_custom_call.1} parent=1 // pred_fallthru
      _
    %253 = vsyncpa [#allocation4], 1
    %254 = vsyncpa [#allocation7], 1
    %255 = vsyncpa [#allocation5], 1
    %256 = vsyncpa [#allocation11], 1

</llo_original>
